<compile_context>
chip_gen: v7x
topology: tpu7x:2x2x1
jax: 0.10.0
libtpu: 0.0.40
codegen_flags: <defaults>
</compile_context>

<pallas_src>
import jax
import jax.numpy as jnp
from jax.experimental import pallas as pl
from jax.experimental.pallas import tpu as pltpu


# ----------------------------------------------------------------------------
# "Buffer" setup -- mirrors RotaryPositionalEmbedding.__init__
# ----------------------------------------------------------------------------
def make_sinusoid(dim: int, max_len: int = 1024) -> jnp.ndarray:
    """sinusoid buffer: (max_len, dim//2) = cat([sin(freqs), cos(freqs)], -1)."""
    half = dim // 2                                  # self.dim in the torch module
    inv_freq = 1.0 / (10000.0 ** (jnp.arange(0.0, half, 2.0, dtype=jnp.float32) / half))
    t = jnp.arange(max_len, dtype=jnp.float32)[:, None]
    freqs = t * inv_freq[None, :]
    return jnp.concatenate([jnp.sin(freqs), jnp.cos(freqs)], axis=-1)


# ----------------------------------------------------------------------------
# One-time table prep (hoist out of the per-call path; cache per (S, D, dtype))
# ----------------------------------------------------------------------------
def _fold_factor(seq_len: int, d: int):
    """Returns (k, method): fold k positions into one 128-lane row when possible."""
    if d % 128 == 0:
        return 1, "roll"                             # already lane-dense
    if d < 128 and d % 2 == 0 and 128 % d == 0 and seq_len % (128 // d) == 0:
        return 128 // d, "perm"                      # lane-fold + block-diag perm
    return 1, "perm"                                 # generic fallback


def make_rope_tables(sinusoid, seq_len: int, d: int, dtype=jnp.float32,
                     table_dtype=None):
    """Returns (m1, m2, p_swap, fold).

    m1/m2 are (S/fold, fold*D) multiplier tables; p_swap is a (d_eff, d_eff)
    permutation (None on the roll path).  out = qk*m1 + half_swap(qk)*m2
    reproduces [q1*sin - q2*cos, q1*cos + q2*sin] in one full-width FMA.
    table_dtype (e.g. bf16 on v6e/v7x) halves table DMA; default = dtype.
    """
    table_dtype = dtype if table_dtype is None else table_dtype
    # Mirrors: sinusoid[:seq_len].repeat_interleave(2, dim=1); split at d//2.
    tab = jnp.repeat(sinusoid[:seq_len, :], 2, axis=1)                   # (S, D)
    sin_part = tab[:, : d // 2]
    cos_part = tab[:, d // 2:]
    m1 = jnp.concatenate([sin_part, sin_part], axis=-1)                  # (S, D)
    m2 = jnp.concatenate([-cos_part, cos_part], axis=-1)                 # (S, D)

    fold, method = _fold_factor(seq_len, d)
    d_eff = fold * d
    m1 = m1.reshape(seq_len // fold, d_eff).astype(table_dtype)
    m2 = m2.reshape(seq_len // fold, d_eff).astype(table_dtype)

    if method == "roll":
        p_swap = None          # half swap handled by a single pltpu.roll in-kernel
    else:
        # Per-D-group half-swap permutation (block-diagonal kron(I_fold, swap_D)).
        c = jnp.arange(d_eff)
        src = (c // d) * d + ((c % d) + d // 2) % d
        p_swap = (jnp.arange(d_eff)[:, None] == src[None, :]).astype(dtype)
    return m1, m2, p_swap, fold


# ----------------------------------------------------------------------------
# Kernels: per-step block is (bn, ts, d_eff); loop the bn sub-blocks with 2-D ops
# ----------------------------------------------------------------------------
def _rope_kernel_roll(x_ref, m1_ref, m2_ref, o_ref):
    half = x_ref.shape[-1] // 2
    m1 = m1_ref[...]                                 # (ts, d_eff), loaded once
    m2 = m2_ref[...]

    @pl.loop(0, x_ref.shape[0])
    def _(i):
        x = x_ref[i]                                 # (ts, d_eff), d_eff % 128 == 0
        # Cyclic roll by exactly half the lane width == half swap (XLU work,
        # overlaps the VPU FMA).
        x_swap = pltpu.roll(x, shift=half, axis=1)
        o_ref[i] = (x * m1 + x_swap * m2).astype(o_ref.dtype)


def _rope_kernel_perm(x_ref, m1_ref, m2_ref, p_ref, o_ref):
    m1 = m1_ref[...]
    m2 = m2_ref[...]
    p = p_ref[...]                                   # (d_eff, d_eff) 0/1 permutation

    @pl.loop(0, x_ref.shape[0])
    def _(i):
        x = x_ref[i]                                 # (ts, d_eff)
        # Half swap via a tiny permutation matmul on the otherwise-idle MXU.
        # HIGHEST precision keeps the f32 mantissa intact (exact for a 0/1 perm).
        x_swap = jnp.dot(x, p, precision=jax.lax.Precision.HIGHEST,
                         preferred_element_type=jnp.float32).astype(x.dtype)
        o_ref[i] = (x * m1 + x_swap * m2).astype(o_ref.dtype)


# ----------------------------------------------------------------------------
# Tiling / VMEM budgeting
# ----------------------------------------------------------------------------
def _block_budget_bytes():
    """(block_budget, vmem_limit) per TPU generation."""
    kind = ""
    try:
        kind = jax.devices()[0].device_kind.lower()
    except Exception:
        pass
    if "v6" in kind:
        # v6e: 128 MiB physical VMEM -- let the double-buffered blocks grow.
        return 16 * 1024 * 1024, 64 * 1024 * 1024
    # v5e (16 MiB default scoped) and v7x (64 MiB physical): stay small.
    return 8 * 1024 * 1024, 32 * 1024 * 1024


def _choose_tiles(n, s_f, d_eff, itemsize, budget):
    """Pick (bn, ts): batch entries and folded-S rows per grid step."""
    sub = 8 if itemsize >= 4 else (16 if itemsize == 2 else 32)
    ts = min(s_f, 1024)                      # 1024 is sublane-aligned when partial
    row_bytes = max(1, ts * d_eff * itemsize)
    # Enough batch entries per block to reach ~512 KiB, capped at 8.
    bn = int(min(n, 8, max(1, (512 * 1024 + row_bytes - 1) // row_bytes)))

    def footprint(bn_, ts_):
        rb = ts_ * d_eff * itemsize
        # double-buffered qk-in + out blocks, both tables, + perm matrix
        return 2 * ((2 * bn_ + 2) * rb + d_eff * d_eff * itemsize)

    while bn > 1 and footprint(bn, ts) > budget:
        bn -= 1
    while ts > sub and footprint(bn, ts) > budget:
        ts = max(sub, ((ts // 2) // sub) * sub)

    # v7x megacore: make sure a parallel grid axis has >= 2 steps when there is
    # enough work to be worth splitting.
    if (pl.cdiv(s_f, ts) == 1 and pl.cdiv(n, bn) == 1
            and n * s_f * d_eff * itemsize >= (2 << 20)):
        if n >= 2:
            bn = (n + 1) // 2
        elif s_f >= 2 * sub:
            ts = max(sub, ((s_f // 2) // sub) * sub)
    return bn, ts


# ----------------------------------------------------------------------------
# Pallas wrapper
# ----------------------------------------------------------------------------
def rope_forward(qk, m1, m2, p_swap=None, fold=1):
    """Forward pass: qk (N, S, D) -> (N, S, D). Tables from make_rope_tables."""
    n, s, d = qk.shape
    assert s % fold == 0
    s_f, d_eff = s // fold, fold * d
    x = qk.reshape(n, s_f, d_eff) if fold != 1 else qk    # free lane-fold reshape

    itemsize = qk.dtype.itemsize
    budget, vmem_limit = _block_budget_bytes()
    bn, ts = _choose_tiles(n, s_f, d_eff, itemsize, budget)
    s_tiles = pl.cdiv(s_f, ts)
    n_tiles = pl.cdiv(n, bn)

    x_spec = pl.BlockSpec((bn, ts, d_eff), lambda j, b: (b, j, 0))
    # Table blocks track the S tile only; their block index is constant over the
    # inner batch axis, so they are fetched once per S tile, not per batch block.
    tab_spec = pl.BlockSpec((ts, d_eff), lambda j, b: (j, 0))
    out_spec = pl.BlockSpec((bn, ts, d_eff), lambda j, b: (b, j, 0))

    if p_swap is None:
        kernel = _rope_kernel_roll
        in_specs = [x_spec, tab_spec, tab_spec]
        args = (x, m1, m2)
        perm_flops = 0
        perm_bytes = 0
    else:
        kernel = _rope_kernel_perm
        in_specs = [x_spec, tab_spec, tab_spec,
                    pl.BlockSpec((d_eff, d_eff), lambda j, b: (0, 0))]
        args = (x, m1, m2, p_swap)
        perm_flops = 2 * n * s_f * d_eff * d_eff
        perm_bytes = d_eff * d_eff * p_swap.dtype.itemsize

    cost = pl.CostEstimate(
        flops=int(3 * n * s * d + perm_flops),
        transcendentals=0,
        bytes_accessed=int(2 * n * s * d * itemsize
                           + 2 * s * d * m1.dtype.itemsize + perm_bytes),
    )

    out = pl.pallas_call(
        kernel,
        out_shape=jax.ShapeDtypeStruct((n, s_f, d_eff), qk.dtype),
        grid_spec=pltpu.PrefetchScalarGridSpec(
            num_scalar_prefetch=0,
            grid=(s_tiles, n_tiles),           # batch innermost: table blocks reused
            in_specs=in_specs,
            out_specs=out_spec,
        ),
        compiler_params=pltpu.CompilerParams(
            dimension_semantics=("parallel", "parallel"),
            vmem_limit_bytes=vmem_limit,
        ),
        cost_estimate=cost,
    )(*args)

    return out.reshape(n, s, d) if fold != 1 else out


def rotary_positional_embedding(qk, sinusoid, table_dtype=None):
    """Drop-in equivalent of RotaryPositionalEmbedding.forward(qk).

    In a real model, build the tables once with make_rope_tables() and call
    rope_forward() directly to keep the table prep out of the per-call path.
    """
    _, s, d = qk.shape
    m1, m2, p_swap, fold = make_rope_tables(sinusoid, s, d, qk.dtype, table_dtype)
    return rope_forward(qk, m1, m2, p_swap, fold)


# Pure-JAX reference (mirrors the torch forward) for a correctness check.
def rope_ref(qk, sinusoid):
    n, s, d = qk.shape
    tab = jnp.repeat(sinusoid[:s, :], 2, axis=1)
    sin_part, cos_part = tab[:, : d // 2], tab[:, d // 2:]
    qk_sin = qk[:, :, : d // 2] * sin_part - qk[:, :, d // 2:] * cos_part
    qk_cos = qk[:, :, : d // 2] * cos_part + qk[:, :, d // 2:] * sin_part
    return jnp.concatenate([qk_sin, qk_cos], axis=-1)


if __name__ == "__main__":
    batch, seq, dim, max_len = 2, 8, 32, 1024
    key = jax.random.PRNGKey(0)
    k1, k2 = jax.random.split(key)

    # --- Case 1: module-consistent small shape (D = 32 -> lane-folded to 128
    #     lanes per row, block-diagonal permutation half-swap on the MXU).
    qk = jax.random.normal(k1, (batch, seq, dim), dtype=jnp.float32)
    sinusoid = make_sinusoid(dim, max_len)
    m1, m2, p_swap, fold = make_rope_tables(sinusoid, seq, dim, qk.dtype)  # built once
    out = jax.block_until_ready(rope_forward(qk, m1, m2, p_swap, fold))
    ref = rope_ref(qk, sinusoid)
    assert out.shape == (batch, seq, dim)
    assert jnp.allclose(out, ref, atol=1e-5, rtol=1e-5)

    # --- Case 2: lane-dense head dim (D = 128 -> single pltpu.roll half-swap).
    dim2 = 128
    qk2 = jax.random.normal(k2, (batch, seq, dim2), dtype=jnp.float32)
    sinusoid2 = make_sinusoid(dim2, max_len)
    out2 = jax.block_until_ready(rotary_positional_embedding(qk2, sinusoid2))
    assert jnp.allclose(out2, rope_ref(qk2, sinusoid2), atol=1e-5, rtol=1e-5)

    print("KERNEL_OK")
</pallas_src>

<mosaic_0001>
module attributes {stable_mosaic.version = 11 : i64} {
  func.func @_rope_kernel_perm(%arg0: i32, %arg1: i32, %arg2: memref<2x2x128xf32, #tpu.memory_space<vmem>>, %arg3: memref<2x128xf32, #tpu.memory_space<vmem>>, %arg4: memref<2x128xf32, #tpu.memory_space<vmem>>, %arg5: memref<128x128xf32, #tpu.memory_space<vmem>>, %arg6: memref<2x2x128xf32, #tpu.memory_space<vmem>>) attributes {dimension_semantics = [#tpu.dimension_semantics<parallel>, #tpu.dimension_semantics<parallel>], iteration_bounds = array<i64: 1, 1>, scalar_prefetch = 0 : i64, scratch_operands = 0 : i64, tpu.core_type = #tpu.core_type<tc>, window_params = [{transform_indices = @transform_0, window_bounds = array<i64: 2, 2, 128>}, {transform_indices = @transform_1, window_bounds = array<i64: 2, 128>}, {transform_indices = @transform_2, window_bounds = array<i64: 2, 128>}, {pipeline_mode = #tpu.pipeline_mode<synchronous>, transform_indices = @transform_3, window_bounds = array<i64: 128, 128>}, {transform_indices = @transform_4, window_bounds = array<i64: 2, 2, 128>}]} {
    %c0 = arith.constant 0 : index
    %c0_0 = arith.constant 0 : index
    %0 = vector.load %arg3[%c0, %c0_0] : memref<2x128xf32, #tpu.memory_space<vmem>>, vector<2x128xf32>
    %c0_1 = arith.constant 0 : index
    %c0_2 = arith.constant 0 : index
    %1 = vector.load %arg4[%c0_1, %c0_2] : memref<2x128xf32, #tpu.memory_space<vmem>>, vector<2x128xf32>
    %c0_3 = arith.constant 0 : index
    %c0_4 = arith.constant 0 : index
    %2 = vector.load %arg5[%c0_3, %c0_4] : memref<128x128xf32, #tpu.memory_space<vmem>>, vector<128x128xf32>
    %c0_i32 = arith.constant 0 : i32
    %c2_i32 = arith.constant 2 : i32
    %3 = arith.addi %c0_i32, %c2_i32 : i32
    %c1_i32 = arith.constant 1 : i32
    scf.for %arg7 = %c0_i32 to %3 step %c1_i32  : i32 {
      %c1_i32_6 = arith.constant 1 : i32
      %4 = arith.muli %arg7, %c1_i32_6 : i32
      %c0_i32_7 = arith.constant 0 : i32
      %5 = arith.addi %c0_i32_7, %4 : i32
      %6 = arith.index_cast %5 : i32 to index
      %c0_8 = arith.constant 0 : index
      %c0_9 = arith.constant 0 : index
      %7 = vector.load %arg2[%6, %c0_8, %c0_9] : memref<2x2x128xf32, #tpu.memory_space<vmem>>, vector<1x2x128xf32>
      %8 = vector.shape_cast %7 : vector<1x2x128xf32> to vector<2x128xf32>
      %cst = arith.constant dense<0.000000e+00> : vector<2x128xf32>
      %9 = tpu.matmul %8, %2, %cst {dimension_numbers = #tpu.dot_dimension_numbers<[1], [0], [0], [1], [0, 0, 1, 1], [], []>, precision = #tpu.contract_precision<fp32>} : vector<2x128xf32>, vector<128x128xf32>, vector<2x128xf32> -> vector<2x128xf32>
      %10 = arith.mulf %8, %0 : vector<2x128xf32>
      %11 = arith.mulf %9, %1 : vector<2x128xf32>
      %12 = arith.addf %10, %11 : vector<2x128xf32>
      %13 = arith.index_cast %5 : i32 to index
      %c0_10 = arith.constant 0 : index
      %c0_11 = arith.constant 0 : index
      %14 = vector.load %arg6[%13, %c0_10, %c0_11] : memref<2x2x128xf32, #tpu.memory_space<vmem>>, vector<1x2x128xf32>
      %15 = vector.shape_cast %14 : vector<1x2x128xf32> to vector<2x128xf32>
      %16 = vector.shape_cast %12 : vector<2x128xf32> to vector<1x2x128xf32>
      tpu.vector_store %arg6[%13, %c0_10, %c0_11], %16 {strides = array<i32>} : memref<2x2x128xf32, #tpu.memory_space<vmem>>, vector<1x2x128xf32>,
    }
    %c2_i32_5 = arith.constant 2 : i32
    return
  }
  func.func @transform_0(%arg0: i32, %arg1: i32) -> (i32, i32, i32) {
    %c0_i32 = arith.constant 0 : i32
    %c0_i32_0 = arith.constant 0 : i32
    return %arg1, %arg0, %c0_i32 : i32, i32, i32
  }
  func.func @transform_1(%arg0: i32, %arg1: i32) -> (i32, i32) {
    %c0_i32 = arith.constant 0 : i32
    %c0_i32_0 = arith.constant 0 : i32
    return %arg0, %c0_i32 : i32, i32
  }
  func.func @transform_2(%arg0: i32, %arg1: i32) -> (i32, i32) {
    %c0_i32 = arith.constant 0 : i32
    %c0_i32_0 = arith.constant 0 : i32
    return %arg0, %c0_i32 : i32, i32
  }
  func.func @transform_3(%arg0: i32, %arg1: i32) -> (i32, i32) {
    %c0_i32 = arith.constant 0 : i32
    %c0_i32_0 = arith.constant 0 : i32
    %c0_i32_1 = arith.constant 0 : i32
    return %c0_i32, %c0_i32_0 : i32, i32
  }
  func.func @transform_4(%arg0: i32, %arg1: i32) -> (i32, i32, i32) {
    %c0_i32 = arith.constant 0 : i32
    %c0_i32_0 = arith.constant 0 : i32
    return %arg1, %arg0, %c0_i32 : i32, i32, i32
  }
}

</mosaic_0001>

<llo_original>
// kernel: tpu_custom_call.1
$region0: #{tpu_custom_call.1}
  #allocation0 [shape = 'u32[]', space=smem, size = 0x4, offset = 0x4, fixed_abs, tag = 'smem constant byte address 0x4 - core index']
  #allocation1 [shape = 'u32[144,128]{1,0:T(1,128)}', space=vmem, size = 0x12000, scoped, tag = 'internal scratch']
  %s0 = inlined_call_operand.hbm [shape: f32[2,2,128], index: 0, kind: input, shape index: {}]
  %s1 = inlined_call_operand.vmem [shape: f32[2,128], index: 1, kind: input, shape index: {}]
  %s2 = inlined_call_operand.vmem [shape: f32[2,128], index: 2, kind: input, shape index: {}]
  %s3 = inlined_call_operand.hbm [shape: f32[128,128], index: 3, kind: input, shape index: {}]
  %s4 = inlined_call_operand.hbm [shape: f32[2,2,128], index: 4, kind: output, shape index: {}]
  %s5 = sld [smem:[#allocation0]]
  $region41: #{tpu_custom_call.1} parent=0
    _
  %s7 = ssub.s32 1, %s5
  %s8 = scalar_select 0, %s7, %s5
  $region1: #{tpu_custom_call.1} parent=0
    #allocation2 [shape = 'u8[2048]{0}', space=vmem, size = 0x800, scoped, tag = 'input window, operand 0, single buffered']
    #allocation3 [shape = 's32[1]{0}', space=sflag, size = 0x4, scoped, tag = 'scoped memory for tpu_custom_call.1']
    #allocation4 [shape = 's32[1]{0}', space=sflag, size = 0x4, scoped, tag = 'scoped memory for tpu_custom_call.1']
    #allocation5 [shape = 'u8[65536]{0}', space=vmem, size = 0x10000, scoped, tag = 'input window, operand 3, single buffered']
    #allocation6 [shape = 's32[1]{0}', space=sflag, size = 0x4, scoped, tag = 'scoped memory for tpu_custom_call.1']
    #allocation7 [shape = 'u8[2048]{0}', space=vmem, size = 0x800, scoped, tag = 'output window, operand 0, single buffered']
    %9 = vsyncpa [#allocation3], 0
    %10 = vsyncpa [#allocation6], 0
    %11 = vsyncpa [#allocation4], 0
    // Predicated region
    $region2: #{tpu_custom_call.1} parent=1 // pred_check
      _
    $region3: #{tpu_custom_call.1} parent=1 // pred_check_branch
      %13 = sbr.rel (0) target = $region5
    $region4: #{tpu_custom_call.1} parent=1 // pred_region
      %s15 = ssub.s32 64, 64
      %16 = vsyncadd [#allocation3], %s15
      %s17 = sshll.u32 [#allocation2], 4
      %s18 = int_to_ptr.vmem [resolvable:$true] %s17
      %23 = dma.hbm_to_vmem [thread:$0]  %s0, 64, %s18, [#allocation3], 32, 32, 2
    $region5: #{tpu_custom_call.1} parent=1 // pred_fallthru
      _
    // Predicated region
    $region6: #{tpu_custom_call.1} parent=1 // pred_check
      _
    $region7: #{tpu_custom_call.1} parent=1 // pred_check_branch
      %25 = sbr.rel (0) target = $region9
    $region8: #{tpu_custom_call.1} parent=1 // pred_region
      _
    $region9: #{tpu_custom_call.1} parent=1 // pred_fallthru
      _
    // Predicated region
    $region10: #{tpu_custom_call.1} parent=1 // pred_check
      _
    $region11: #{tpu_custom_call.1} parent=1 // pred_check_branch
      %27 = sbr.rel (0) target = $region13
    $region12: #{tpu_custom_call.1} parent=1 // pred_region
      _
    $region13: #{tpu_custom_call.1} parent=1 // pred_fallthru
      _
    // Predicated region
    $region14: #{tpu_custom_call.1} parent=1 // pred_check
      _
    $region15: #{tpu_custom_call.1} parent=1 // pred_check_branch
      %29 = sbr.rel (0) target = $region17
    $region16: #{tpu_custom_call.1} parent=1 // pred_region
      %s31 = ssub.s32 2048, 2048
      %32 = vsyncadd [#allocation6], %s31
      %s33 = sshll.u32 [#allocation5], 4
      %s34 = int_to_ptr.vmem [resolvable:$true] %s33
      %39 = dma.hbm_to_vmem [thread:$0]  %s3, 2048, %s34, [#allocation6], 128, 128, 8
    $region17: #{tpu_custom_call.1} parent=1 // pred_fallthru
      _
    // Predicated region
    $region18: #{tpu_custom_call.1} parent=1 // pred_check
      _
    $region19: #{tpu_custom_call.1} parent=1 // pred_check_branch
      %41 = sbr.rel (0) target = $region21
    $region20: #{tpu_custom_call.1} parent=1 // pred_region
      %42 = dma.done [#allocation3], 64
    $region21: #{tpu_custom_call.1} parent=1 // pred_fallthru
      _
    // Predicated region
    $region22: #{tpu_custom_call.1} parent=1 // pred_check
      _
    $region23: #{tpu_custom_call.1} parent=1 // pred_check_branch
      %44 = sbr.rel (0) target = $region25
    $region24: #{tpu_custom_call.1} parent=1 // pred_region
      %45 = dma.done [#allocation6], 2048
    $region25: #{tpu_custom_call.1} parent=1 // pred_fallthru
      _
    %v46 = vld [vmem:[%s1] sm:$0x3]
    %v47 = vld [vmem:[%s2] sm:$0x3]
    %v48 = vld [vmem:[#allocation5] sm:$0xff]
    %v49 = vld [vmem:[#allocation5 + $0x8] sm:$0xff]
    %v50 = vld [vmem:[#allocation5 + $0x10] sm:$0xff]
    %v51 = vld [vmem:[#allocation5 + $0x18] sm:$0xff]
    %v52 = vld [vmem:[#allocation5 + $0x20] sm:$0xff]
    %v53 = vld [vmem:[#allocation5 + $0x28] sm:$0xff]
    %v54 = vld [vmem:[#allocation5 + $0x30] sm:$0xff]
    %v55 = vld [vmem:[#allocation5 + $0x38] sm:$0xff]
    %v56 = vld [vmem:[#allocation5 + $0x40] sm:$0xff]
    %v57 = vld [vmem:[#allocation5 + $0x48] sm:$0xff]
    %v58 = vld [vmem:[#allocation5 + $0x50] sm:$0xff]
    %v59 = vld [vmem:[#allocation5 + $0x58] sm:$0xff]
    %v60 = vld [vmem:[#allocation5 + $0x60] sm:$0xff]
    %v61 = vld [vmem:[#allocation5 + $0x68] sm:$0xff]
    %v62 = vld [vmem:[#allocation5 + $0x70] sm:$0xff]
    %v63 = vld [vmem:[#allocation5 + $0x78] sm:$0xff]
    loop: start=0, step=1, limit=2
    $region26: #{tpu_custom_call.1} parent=1 // loop_pre_header
      _
    $region27: #{tpu_custom_call.1} parent=1 // loop_header
      %s65 = sphi 0, %s69
      %p66 = scmp.ge.s32.totalorder %s65, 2
    $region28: #{tpu_custom_call.1} parent=1 // loop_header_branch
      %68 = sbr.rel (%p66) target = $region32
    $region29: #{tpu_custom_call.1} parent=1 // loop_body
      %s70 = smul.u32 %s65, 2
      %s71 = scalar_lea.vmem [#allocation2], %s70
      %v72 = vld [vmem:[%s71] sm:$0x3]
      %73 = vmatprep.subr.mxu0 0.0
      %v74 = vand.u32 %v48, 4294901760
      %75 = vmatpush1.msra.mxu0 %v74
      %76 = vmatprep.subr.mxu0 0.0
      %v77 = vand.u32 %v49, 4294901760
      %78 = vmatpush1.msra.mxu0 %v77
      %79 = vmatprep.subr.mxu0 0.0
      %v80 = vand.u32 %v50, 4294901760
      %81 = vmatpush1.msra.mxu0 %v80
      %82 = vmatprep.subr.mxu0 0.0
      %v83 = vand.u32 %v51, 4294901760
      %84 = vmatpush1.msra.mxu0 %v83
      %85 = vmatprep.subr.mxu0 0.0
      %v86 = vand.u32 %v52, 4294901760
      %87 = vmatpush1.msra.mxu0 %v86
      %88 = vmatprep.subr.mxu0 0.0
      %v89 = vand.u32 %v53, 4294901760
      %90 = vmatpush1.msra.mxu0 %v89
      %91 = vmatprep.subr.mxu0 0.0
      %v92 = vand.u32 %v54, 4294901760
      %93 = vmatpush1.msra.mxu0 %v92
      %94 = vmatprep.subr.mxu0 0.0
      %v95 = vand.u32 %v55, 4294901760
      %96 = vmatpush1.msra.mxu0 %v95
      %97 = vmatprep.subr.mxu0 0.0
      %v98 = vand.u32 %v56, 4294901760
      %99 = vmatpush1.msra.mxu0 %v98
      %100 = vmatprep.subr.mxu0 0.0
      %v101 = vand.u32 %v57, 4294901760
      %102 = vmatpush1.msra.mxu0 %v101
      %103 = vmatprep.subr.mxu0 0.0
      %v104 = vand.u32 %v58, 4294901760
      %105 = vmatpush1.msra.mxu0 %v104
      %106 = vmatprep.subr.mxu0 0.0
      %v107 = vand.u32 %v59, 4294901760
      %108 = vmatpush1.msra.mxu0 %v107
      %109 = vmatprep.subr.mxu0 0.0
      %v110 = vand.u32 %v60, 4294901760
      %111 = vmatpush1.msra.mxu0 %v110
      %112 = vmatprep.subr.mxu0 0.0
      %v113 = vand.u32 %v61, 4294901760
      %114 = vmatpush1.msra.mxu0 %v113
      %115 = vmatprep.subr.mxu0 0.0
      %v116 = vand.u32 %v62, 4294901760
      %117 = vmatpush1.msra.mxu0 %v116
      %118 = vmatprep.subr.mxu0 0.0
      %v119 = vand.u32 %v63, 4294901760
      %120 = vmatpush1.msra.mxu0 %v119
      %121 = vmatprep.subr.mxu0 0.0
      %122 = vmatpush1.msra.mxu0 0.0
      %123 = vmatprep.subr.mxu0 0.0
      %124 = vmatpush1.msra.mxu0 0.0
      %125 = vmatprep.subr.mxu0 0.0
      %126 = vmatpush1.msra.mxu0 0.0
      %127 = vmatprep.subr.mxu0 0.0
      %128 = vmatpush1.msra.mxu0 0.0
      %129 = vmatprep.subr.mxu0 0.0
      %130 = vmatpush1.msra.mxu0 0.0
      %131 = vmatprep.subr.mxu0 0.0
      %132 = vmatpush1.msra.mxu0 0.0
      %133 = vmatprep.subr.mxu0 0.0
      %134 = vmatpush1.msra.mxu0 0.0
      %135 = vmatprep.subr.mxu0 0.0
      %136 = vmatpush1.msra.mxu0 0.0
      %137 = vmatprep.subr.mxu0 0.0
      %138 = vmatpush1.msra.mxu0 0.0
      %139 = vmatprep.subr.mxu0 0.0
      %140 = vmatpush1.msra.mxu0 0.0
      %141 = vmatprep.subr.mxu0 0.0
      %142 = vmatpush1.msra.mxu0 0.0
      %143 = vmatprep.subr.mxu0 0.0
      %144 = vmatpush1.msra.mxu0 0.0
      %145 = vmatprep.subr.mxu0 0.0
      %146 = vmatpush1.msra.mxu0 0.0
      %147 = vmatprep.subr.mxu0 0.0
      %148 = vmatpush1.msra.mxu0 0.0
      %149 = vmatprep.subr.mxu0 0.0
      %150 = vmatpush1.msra.mxu0 0.0
      %151 = vmatprep.subr.mxu0 0.0
      %152 = vmatpush1.msra.mxu0 0.0
      %153 = vmatprep.mubr.f32.mxu0 0.0
      %v154 = vand.u32 %v72, 4294901760
      %v155 = vsub.f32 %v72, %v154
      %v156 = vand.u32 %v155, 4294901760
      %v157 = vsub.f32 %v155, %v156
      %v158 = vand.u32 %v157, 4294901760
      %159 = vmatmul.mubr.f32.gmra.mrb[0].mxu0 %v158
      %v160 = vpop.f32.mrb[0].mxu0
      %v161 = vadd.f32 0.0, %v160
      %v162 = vpop.f32.mrb[0].mxu0
      %163 = vdwg.mxu0
      %164 = vmatprep.subr.mxu0 0.0
      %v165 = vand.u32 %v48, 4294901760
      %v166 = vsub.f32 %v48, %v165
      %v167 = vand.u32 %v166, 4294901760
      %v168 = vsub.f32 %v166, %v167
      %v169 = vand.u32 %v168, 4294901760
      %170 = vmatpush1.msra.mxu0 %v169
      %171 = vmatprep.subr.mxu0 0.0
      %v172 = vand.u32 %v49, 4294901760
      %v173 = vsub.f32 %v49, %v172
      %v174 = vand.u32 %v173, 4294901760
      %v175 = vsub.f32 %v173, %v174
      %v176 = vand.u32 %v175, 4294901760
      %177 = vmatpush1.msra.mxu0 %v176
      %178 = vmatprep.subr.mxu0 0.0
      %v179 = vand.u32 %v50, 4294901760
      %v180 = vsub.f32 %v50, %v179
      %v181 = vand.u32 %v180, 4294901760
      %v182 = vsub.f32 %v180, %v181
      %v183 = vand.u32 %v182, 4294901760
      %184 = vmatpush1.msra.mxu0 %v183
      %185 = vmatprep.subr.mxu0 0.0
      %v186 = vand.u32 %v51, 4294901760
      %v187 = vsub.f32 %v51, %v186
      %v188 = vand.u32 %v187, 4294901760
      %v189 = vsub.f32 %v187, %v188
      %v190 = vand.u32 %v189, 4294901760
      %191 = vmatpush1.msra.mxu0 %v190
      %192 = vmatprep.subr.mxu0 0.0
      %v193 = vand.u32 %v52, 4294901760
      %v194 = vsub.f32 %v52, %v193
      %v195 = vand.u32 %v194, 4294901760
      %v196 = vsub.f32 %v194, %v195
      %v197 = vand.u32 %v196, 4294901760
      %198 = vmatpush1.msra.mxu0 %v197
      %199 = vmatprep.subr.mxu0 0.0
      %v200 = vand.u32 %v53, 4294901760
      %v201 = vsub.f32 %v53, %v200
      %v202 = vand.u32 %v201, 4294901760
      %v203 = vsub.f32 %v201, %v202
      %v204 = vand.u32 %v203, 4294901760
      %205 = vmatpush1.msra.mxu0 %v204
      %206 = vmatprep.subr.mxu0 0.0
      %v207 = vand.u32 %v54, 4294901760
      %v208 = vsub.f32 %v54, %v207
      %v209 = vand.u32 %v208, 4294901760
      %v210 = vsub.f32 %v208, %v209
      %v211 = vand.u32 %v210, 4294901760
      %212 = vmatpush1.msra.mxu0 %v211
      %213 = vmatprep.subr.mxu0 0.0
      %v214 = vand.u32 %v55, 4294901760
      %v215 = vsub.f32 %v55, %v214
      %v216 = vand.u32 %v215, 4294901760
      %v217 = vsub.f32 %v215, %v216
      %v218 = vand.u32 %v217, 4294901760
      %219 = vmatpush1.msra.mxu0 %v218
      %220 = vmatprep.subr.mxu0 0.0
      %v221 = vand.u32 %v56, 4294901760
      %v222 = vsub.f32 %v56, %v221
      %v223 = vand.u32 %v222, 4294901760
      %v224 = vsub.f32 %v222, %v223
      %v225 = vand.u32 %v224, 4294901760
      %226 = vmatpush1.msra.mxu0 %v225
      %227 = vmatprep.subr.mxu0 0.0
      %v228 = vand.u32 %v57, 4294901760
      %v229 = vsub.f32 %v57, %v228
      %v230 = vand.u32 %v229, 4294901760
      %v231 = vsub.f32 %v229, %v230
      %v232 = vand.u32 %v231, 4294901760
      %233 = vmatpush1.msra.mxu0 %v232
      %234 = vmatprep.subr.mxu0 0.0
      %v235 = vand.u32 %v58, 4294901760
      %v236 = vsub.f32 %v58, %v235
      %v237 = vand.u32 %v236, 4294901760
      %v238 = vsub.f32 %v236, %v237
      %v239 = vand.u32 %v238, 4294901760
      %240 = vmatpush1.msra.mxu0 %v239
      %241 = vmatprep.subr.mxu0 0.0
      %v242 = vand.u32 %v59, 4294901760
      %v243 = vsub.f32 %v59, %v242
      %v244 = vand.u32 %v243, 4294901760
      %v245 = vsub.f32 %v243, %v244
      %v246 = vand.u32 %v245, 4294901760
      %247 = vmatpush1.msra.mxu0 %v246
      %248 = vmatprep.subr.mxu0 0.0
      %v249 = vand.u32 %v60, 4294901760
      %v250 = vsub.f32 %v60, %v249
      %v251 = vand.u32 %v250, 4294901760
      %v252 = vsub.f32 %v250, %v251
      %v253 = vand.u32 %v252, 4294901760
      %254 = vmatpush1.msra.mxu0 %v253
      %255 = vmatprep.subr.mxu0 0.0
      %v256 = vand.u32 %v61, 4294901760
      %v257 = vsub.f32 %v61, %v256
      %v258 = vand.u32 %v257, 4294901760
      %v259 = vsub.f32 %v257, %v258
      %v260 = vand.u32 %v259, 4294901760
      %261 = vmatpush1.msra.mxu0 %v260
      %262 = vmatprep.subr.mxu0 0.0
      %v263 = vand.u32 %v62, 4294901760
      %v264 = vsub.f32 %v62, %v263
      %v265 = vand.u32 %v264, 4294901760
      %v266 = vsub.f32 %v264, %v265
      %v267 = vand.u32 %v266, 4294901760
      %268 = vmatpush1.msra.mxu0 %v267
      %269 = vmatprep.subr.mxu0 0.0
      %v270 = vand.u32 %v63, 4294901760
      %v271 = vsub.f32 %v63, %v270
      %v272 = vand.u32 %v271, 4294901760
      %v273 = vsub.f32 %v271, %v272
      %v274 = vand.u32 %v273, 4294901760
      %275 = vmatpush1.msra.mxu0 %v274
      %276 = vmatprep.subr.mxu0 0.0
      %277 = vmatpush1.msra.mxu0 0.0
      %278 = vmatprep.subr.mxu0 0.0
      %279 = vmatpush1.msra.mxu0 0.0
      %280 = vmatprep.subr.mxu0 0.0
      %281 = vmatpush1.msra.mxu0 0.0
      %282 = vmatprep.subr.mxu0 0.0
      %283 = vmatpush1.msra.mxu0 0.0
      %284 = vmatprep.subr.mxu0 0.0
      %285 = vmatpush1.msra.mxu0 0.0
      %286 = vmatprep.subr.mxu0 0.0
      %287 = vmatpush1.msra.mxu0 0.0
      %288 = vmatprep.subr.mxu0 0.0
      %289 = vmatpush1.msra.mxu0 0.0
      %290 = vmatprep.subr.mxu0 0.0
      %291 = vmatpush1.msra.mxu0 0.0
      %292 = vmatprep.subr.mxu0 0.0
      %293 = vmatpush1.msra.mxu0 0.0
      %294 = vmatprep.subr.mxu0 0.0
      %295 = vmatpush1.msra.mxu0 0.0
      %296 = vmatprep.subr.mxu0 0.0
      %297 = vmatpush1.msra.mxu0 0.0
      %298 = vmatprep.subr.mxu0 0.0
      %299 = vmatpush1.msra.mxu0 0.0
      %300 = vmatprep.subr.mxu0 0.0
      %301 = vmatpush1.msra.mxu0 0.0
      %302 = vmatprep.subr.mxu0 0.0
      %303 = vmatpush1.msra.mxu0 0.0
      %304 = vmatprep.subr.mxu0 0.0
      %305 = vmatpush1.msra.mxu0 0.0
      %306 = vmatprep.subr.mxu0 0.0
      %307 = vmatpush1.msra.mxu0 0.0
      %308 = vmatprep.mubr.f32.mxu0 0.0
      %v309 = vand.u32 %v72, 4294901760
      %310 = vmatmul.mubr.f32.gmra.mrb[0].mxu0 %v309
      %v311 = vpop.f32.mrb[0].mxu0
      %v312 = vadd.f32 %v161, %v311
      %v313 = vpop.f32.mrb[0].mxu0
      %314 = vdwg.mxu0
      %315 = vmatprep.subr.mxu0 0.0
      %v316 = vand.u32 %v48, 4294901760
      %v317 = vsub.f32 %v48, %v316
      %318 = vmatpush1.msra.mxu0 %v317
      %319 = vmatprep.subr.mxu0 0.0
      %v320 = vand.u32 %v49, 4294901760
      %v321 = vsub.f32 %v49, %v320
      %322 = vmatpush1.msra.mxu0 %v321
      %323 = vmatprep.subr.mxu0 0.0
      %v324 = vand.u32 %v50, 4294901760
      %v325 = vsub.f32 %v50, %v324
      %326 = vmatpush1.msra.mxu0 %v325
      %327 = vmatprep.subr.mxu0 0.0
      %v328 = vand.u32 %v51, 4294901760
      %v329 = vsub.f32 %v51, %v328
      %330 = vmatpush1.msra.mxu0 %v329
      %331 = vmatprep.subr.mxu0 0.0
      %v332 = vand.u32 %v52, 4294901760
      %v333 = vsub.f32 %v52, %v332
      %334 = vmatpush1.msra.mxu0 %v333
      %335 = vmatprep.subr.mxu0 0.0
      %v336 = vand.u32 %v53, 4294901760
      %v337 = vsub.f32 %v53, %v336
      %338 = vmatpush1.msra.mxu0 %v337
      %339 = vmatprep.subr.mxu0 0.0
      %v340 = vand.u32 %v54, 4294901760
      %v341 = vsub.f32 %v54, %v340
      %342 = vmatpush1.msra.mxu0 %v341
      %343 = vmatprep.subr.mxu0 0.0
      %v344 = vand.u32 %v55, 4294901760
      %v345 = vsub.f32 %v55, %v344
      %346 = vmatpush1.msra.mxu0 %v345
      %347 = vmatprep.subr.mxu0 0.0
      %v348 = vand.u32 %v56, 4294901760
      %v349 = vsub.f32 %v56, %v348
      %350 = vmatpush1.msra.mxu0 %v349
      %351 = vmatprep.subr.mxu0 0.0
      %v352 = vand.u32 %v57, 4294901760
      %v353 = vsub.f32 %v57, %v352
      %354 = vmatpush1.msra.mxu0 %v353
      %355 = vmatprep.subr.mxu0 0.0
      %v356 = vand.u32 %v58, 4294901760
      %v357 = vsub.f32 %v58, %v356
      %358 = vmatpush1.msra.mxu0 %v357
      %359 = vmatprep.subr.mxu0 0.0
      %v360 = vand.u32 %v59, 4294901760
      %v361 = vsub.f32 %v59, %v360
      %362 = vmatpush1.msra.mxu0 %v361
      %363 = vmatprep.subr.mxu0 0.0
      %v364 = vand.u32 %v60, 4294901760
      %v365 = vsub.f32 %v60, %v364
      %366 = vmatpush1.msra.mxu0 %v365
      %367 = vmatprep.subr.mxu0 0.0
      %v368 = vand.u32 %v61, 4294901760
      %v369 = vsub.f32 %v61, %v368
      %370 = vmatpush1.msra.mxu0 %v369
      %371 = vmatprep.subr.mxu0 0.0
      %v372 = vand.u32 %v62, 4294901760
      %v373 = vsub.f32 %v62, %v372
      %374 = vmatpush1.msra.mxu0 %v373
      %375 = vmatprep.subr.mxu0 0.0
      %v376 = vand.u32 %v63, 4294901760
      %v377 = vsub.f32 %v63, %v376
      %378 = vmatpush1.msra.mxu0 %v377
      %379 = vmatprep.subr.mxu0 0.0
      %380 = vmatpush1.msra.mxu0 0.0
      %381 = vmatprep.subr.mxu0 0.0
      %382 = vmatpush1.msra.mxu0 0.0
      %383 = vmatprep.subr.mxu0 0.0
      %384 = vmatpush1.msra.mxu0 0.0
      %385 = vmatprep.subr.mxu0 0.0
      %386 = vmatpush1.msra.mxu0 0.0
      %387 = vmatprep.subr.mxu0 0.0
      %388 = vmatpush1.msra.mxu0 0.0
      %389 = vmatprep.subr.mxu0 0.0
      %390 = vmatpush1.msra.mxu0 0.0
      %391 = vmatprep.subr.mxu0 0.0
      %392 = vmatpush1.msra.mxu0 0.0
      %393 = vmatprep.subr.mxu0 0.0
      %394 = vmatpush1.msra.mxu0 0.0
      %395 = vmatprep.subr.mxu0 0.0
      %396 = vmatpush1.msra.mxu0 0.0
      %397 = vmatprep.subr.mxu0 0.0
      %398 = vmatpush1.msra.mxu0 0.0
      %399 = vmatprep.subr.mxu0 0.0
      %400 = vmatpush1.msra.mxu0 0.0
      %401 = vmatprep.subr.mxu0 0.0
      %402 = vmatpush1.msra.mxu0 0.0
      %403 = vmatprep.subr.mxu0 0.0
      %404 = vmatpush1.msra.mxu0 0.0
      %405 = vmatprep.subr.mxu0 0.0
      %406 = vmatpush1.msra.mxu0 0.0
      %407 = vmatprep.subr.mxu0 0.0
      %408 = vmatpush1.msra.mxu0 0.0
      %409 = vmatprep.subr.mxu0 0.0
      %410 = vmatpush1.msra.mxu0 0.0
      %411 = vmatprep.mubr.f32.mxu0 0.0
      %v412 = vand.u32 %v72, 4294901760
      %v413 = vsub.f32 %v72, %v412
      %414 = vmatmul.mubr.f32.gmra.mrb[0].mxu0 %v413
      %v415 = vpop.f32.mrb[0].mxu0
      %v416 = vadd.f32 %v312, %v415
      %v417 = vpop.f32.mrb[0].mxu0
      %418 = vdwg.mxu0
      %419 = vmatprep.subr.mxu0 0.0
      %v420 = vand.u32 %v48, 4294901760
      %421 = vmatpush1.msra.mxu0 %v420
      %422 = vmatprep.subr.mxu0 0.0
      %v423 = vand.u32 %v49, 4294901760
      %424 = vmatpush1.msra.mxu0 %v423
      %425 = vmatprep.subr.mxu0 0.0
      %v426 = vand.u32 %v50, 4294901760
      %427 = vmatpush1.msra.mxu0 %v426
      %428 = vmatprep.subr.mxu0 0.0
      %v429 = vand.u32 %v51, 4294901760
      %430 = vmatpush1.msra.mxu0 %v429
      %431 = vmatprep.subr.mxu0 0.0
      %v432 = vand.u32 %v52, 4294901760
      %433 = vmatpush1.msra.mxu0 %v432
      %434 = vmatprep.subr.mxu0 0.0
      %v435 = vand.u32 %v53, 4294901760
      %436 = vmatpush1.msra.mxu0 %v435
      %437 = vmatprep.subr.mxu0 0.0
      %v438 = vand.u32 %v54, 4294901760
      %439 = vmatpush1.msra.mxu0 %v438
      %440 = vmatprep.subr.mxu0 0.0
      %v441 = vand.u32 %v55, 4294901760
      %442 = vmatpush1.msra.mxu0 %v441
      %443 = vmatprep.subr.mxu0 0.0
      %v444 = vand.u32 %v56, 4294901760
      %445 = vmatpush1.msra.mxu0 %v444
      %446 = vmatprep.subr.mxu0 0.0
      %v447 = vand.u32 %v57, 4294901760
      %448 = vmatpush1.msra.mxu0 %v447
      %449 = vmatprep.subr.mxu0 0.0
      %v450 = vand.u32 %v58, 4294901760
      %451 = vmatpush1.msra.mxu0 %v450
      %452 = vmatprep.subr.mxu0 0.0
      %v453 = vand.u32 %v59, 4294901760
      %454 = vmatpush1.msra.mxu0 %v453
      %455 = vmatprep.subr.mxu0 0.0
      %v456 = vand.u32 %v60, 4294901760
      %457 = vmatpush1.msra.mxu0 %v456
      %458 = vmatprep.subr.mxu0 0.0
      %v459 = vand.u32 %v61, 4294901760
      %460 = vmatpush1.msra.mxu0 %v459
      %461 = vmatprep.subr.mxu0 0.0
      %v462 = vand.u32 %v62, 4294901760
      %463 = vmatpush1.msra.mxu0 %v462
      %464 = vmatprep.subr.mxu0 0.0
      %v465 = vand.u32 %v63, 4294901760
      %466 = vmatpush1.msra.mxu0 %v465
      %467 = vmatprep.subr.mxu0 0.0
      %468 = vmatpush1.msra.mxu0 0.0
      %469 = vmatprep.subr.mxu0 0.0
      %470 = vmatpush1.msra.mxu0 0.0
      %471 = vmatprep.subr.mxu0 0.0
      %472 = vmatpush1.msra.mxu0 0.0
      %473 = vmatprep.subr.mxu0 0.0
      %474 = vmatpush1.msra.mxu0 0.0
      %475 = vmatprep.subr.mxu0 0.0
      %476 = vmatpush1.msra.mxu0 0.0
      %477 = vmatprep.subr.mxu0 0.0
      %478 = vmatpush1.msra.mxu0 0.0
      %479 = vmatprep.subr.mxu0 0.0
      %480 = vmatpush1.msra.mxu0 0.0
      %481 = vmatprep.subr.mxu0 0.0
      %482 = vmatpush1.msra.mxu0 0.0
      %483 = vmatprep.subr.mxu0 0.0
      %484 = vmatpush1.msra.mxu0 0.0
      %485 = vmatprep.subr.mxu0 0.0
      %486 = vmatpush1.msra.mxu0 0.0
      %487 = vmatprep.subr.mxu0 0.0
      %488 = vmatpush1.msra.mxu0 0.0
      %489 = vmatprep.subr.mxu0 0.0
      %490 = vmatpush1.msra.mxu0 0.0
      %491 = vmatprep.subr.mxu0 0.0
      %492 = vmatpush1.msra.mxu0 0.0
      %493 = vmatprep.subr.mxu0 0.0
      %494 = vmatpush1.msra.mxu0 0.0
      %495 = vmatprep.subr.mxu0 0.0
      %496 = vmatpush1.msra.mxu0 0.0
      %497 = vmatprep.subr.mxu0 0.0
      %498 = vmatpush1.msra.mxu0 0.0
      %499 = vmatprep.mubr.f32.mxu0 0.0
      %v500 = vand.u32 %v72, 4294901760
      %v501 = vsub.f32 %v72, %v500
      %v502 = vand.u32 %v501, 4294901760
      %503 = vmatmul.mubr.f32.gmra.mrb[0].mxu0 %v502
      %v504 = vpop.f32.mrb[0].mxu0
      %v505 = vadd.f32 %v416, %v504
      %v506 = vpop.f32.mrb[0].mxu0
      %507 = vdwg.mxu0
      %508 = vmatprep.subr.mxu0 0.0
      %v509 = vand.u32 %v48, 4294901760
      %v510 = vsub.f32 %v48, %v509
      %v511 = vand.u32 %v510, 4294901760
      %512 = vmatpush1.msra.mxu0 %v511
      %513 = vmatprep.subr.mxu0 0.0
      %v514 = vand.u32 %v49, 4294901760
      %v515 = vsub.f32 %v49, %v514
      %v516 = vand.u32 %v515, 4294901760
      %517 = vmatpush1.msra.mxu0 %v516
      %518 = vmatprep.subr.mxu0 0.0
      %v519 = vand.u32 %v50, 4294901760
      %v520 = vsub.f32 %v50, %v519
      %v521 = vand.u32 %v520, 4294901760
      %522 = vmatpush1.msra.mxu0 %v521
      %523 = vmatprep.subr.mxu0 0.0
      %v524 = vand.u32 %v51, 4294901760
      %v525 = vsub.f32 %v51, %v524
      %v526 = vand.u32 %v525, 4294901760
      %527 = vmatpush1.msra.mxu0 %v526
      %528 = vmatprep.subr.mxu0 0.0
      %v529 = vand.u32 %v52, 4294901760
      %v530 = vsub.f32 %v52, %v529
      %v531 = vand.u32 %v530, 4294901760
      %532 = vmatpush1.msra.mxu0 %v531
      %533 = vmatprep.subr.mxu0 0.0
      %v534 = vand.u32 %v53, 4294901760
      %v535 = vsub.f32 %v53, %v534
      %v536 = vand.u32 %v535, 4294901760
      %537 = vmatpush1.msra.mxu0 %v536
      %538 = vmatprep.subr.mxu0 0.0
      %v539 = vand.u32 %v54, 4294901760
      %v540 = vsub.f32 %v54, %v539
      %v541 = vand.u32 %v540, 4294901760
      %542 = vmatpush1.msra.mxu0 %v541
      %543 = vmatprep.subr.mxu0 0.0
      %v544 = vand.u32 %v55, 4294901760
      %v545 = vsub.f32 %v55, %v544
      %v546 = vand.u32 %v545, 4294901760
      %547 = vmatpush1.msra.mxu0 %v546
      %548 = vmatprep.subr.mxu0 0.0
      %v549 = vand.u32 %v56, 4294901760
      %v550 = vsub.f32 %v56, %v549
      %v551 = vand.u32 %v550, 4294901760
      %552 = vmatpush1.msra.mxu0 %v551
      %553 = vmatprep.subr.mxu0 0.0
      %v554 = vand.u32 %v57, 4294901760
      %v555 = vsub.f32 %v57, %v554
      %v556 = vand.u32 %v555, 4294901760
      %557 = vmatpush1.msra.mxu0 %v556
      %558 = vmatprep.subr.mxu0 0.0
      %v559 = vand.u32 %v58, 4294901760
      %v560 = vsub.f32 %v58, %v559
      %v561 = vand.u32 %v560, 4294901760
      %562 = vmatpush1.msra.mxu0 %v561
      %563 = vmatprep.subr.mxu0 0.0
      %v564 = vand.u32 %v59, 4294901760
      %v565 = vsub.f32 %v59, %v564
      %v566 = vand.u32 %v565, 4294901760
      %567 = vmatpush1.msra.mxu0 %v566
      %568 = vmatprep.subr.mxu0 0.0
      %v569 = vand.u32 %v60, 4294901760
      %v570 = vsub.f32 %v60, %v569
      %v571 = vand.u32 %v570, 4294901760
      %572 = vmatpush1.msra.mxu0 %v571
      %573 = vmatprep.subr.mxu0 0.0
      %v574 = vand.u32 %v61, 4294901760
      %v575 = vsub.f32 %v61, %v574
      %v576 = vand.u32 %v575, 4294901760
      %577 = vmatpush1.msra.mxu0 %v576
      %578 = vmatprep.subr.mxu0 0.0
      %v579 = vand.u32 %v62, 4294901760
      %v580 = vsub.f32 %v62, %v579
      %v581 = vand.u32 %v580, 4294901760
      %582 = vmatpush1.msra.mxu0 %v581
      %583 = vmatprep.subr.mxu0 0.0
      %v584 = vand.u32 %v63, 4294901760
      %v585 = vsub.f32 %v63, %v584
      %v586 = vand.u32 %v585, 4294901760
      %587 = vmatpush1.msra.mxu0 %v586
      %588 = vmatprep.subr.mxu0 0.0
      %589 = vmatpush1.msra.mxu0 0.0
      %590 = vmatprep.subr.mxu0 0.0
      %591 = vmatpush1.msra.mxu0 0.0
      %592 = vmatprep.subr.mxu0 0.0
      %593 = vmatpush1.msra.mxu0 0.0
      %594 = vmatprep.subr.mxu0 0.0
      %595 = vmatpush1.msra.mxu0 0.0
      %596 = vmatprep.subr.mxu0 0.0
      %597 = vmatpush1.msra.mxu0 0.0
      %598 = vmatprep.subr.mxu0 0.0
      %599 = vmatpush1.msra.mxu0 0.0
      %600 = vmatprep.subr.mxu0 0.0
      %601 = vmatpush1.msra.mxu0 0.0
      %602 = vmatprep.subr.mxu0 0.0
      %603 = vmatpush1.msra.mxu0 0.0
      %604 = vmatprep.subr.mxu0 0.0
      %605 = vmatpush1.msra.mxu0 0.0
      %606 = vmatprep.subr.mxu0 0.0
      %607 = vmatpush1.msra.mxu0 0.0
      %608 = vmatprep.subr.mxu0 0.0
      %609 = vmatpush1.msra.mxu0 0.0
      %610 = vmatprep.subr.mxu0 0.0
      %611 = vmatpush1.msra.mxu0 0.0
      %612 = vmatprep.subr.mxu0 0.0
      %613 = vmatpush1.msra.mxu0 0.0
      %614 = vmatprep.subr.mxu0 0.0
      %615 = vmatpush1.msra.mxu0 0.0
      %616 = vmatprep.subr.mxu0 0.0
      %617 = vmatpush1.msra.mxu0 0.0
      %618 = vmatprep.subr.mxu0 0.0
      %619 = vmatpush1.msra.mxu0 0.0
      %620 = vmatprep.mubr.f32.mxu0 0.0
      %v621 = vand.u32 %v72, 4294901760
      %622 = vmatmul.mubr.f32.gmra.mrb[0].mxu0 %v621
      %v623 = vpop.f32.mrb[0].mxu0
      %v624 = vadd.f32 %v505, %v623
      %v625 = vpop.f32.mrb[0].mxu0
      %626 = vdwg.mxu0
      %627 = vmatprep.subr.mxu0 0.0
      %v628 = vand.u32 %v48, 4294901760
      %629 = vmatpush1.msra.mxu0 %v628
      %630 = vmatprep.subr.mxu0 0.0
      %v631 = vand.u32 %v49, 4294901760
      %632 = vmatpush1.msra.mxu0 %v631
      %633 = vmatprep.subr.mxu0 0.0
      %v634 = vand.u32 %v50, 4294901760
      %635 = vmatpush1.msra.mxu0 %v634
      %636 = vmatprep.subr.mxu0 0.0
      %v637 = vand.u32 %v51, 4294901760
      %638 = vmatpush1.msra.mxu0 %v637
      %639 = vmatprep.subr.mxu0 0.0
      %v640 = vand.u32 %v52, 4294901760
      %641 = vmatpush1.msra.mxu0 %v640
      %642 = vmatprep.subr.mxu0 0.0
      %v643 = vand.u32 %v53, 4294901760
      %644 = vmatpush1.msra.mxu0 %v643
      %645 = vmatprep.subr.mxu0 0.0
      %v646 = vand.u32 %v54, 4294901760
      %647 = vmatpush1.msra.mxu0 %v646
      %648 = vmatprep.subr.mxu0 0.0
      %v649 = vand.u32 %v55, 4294901760
      %650 = vmatpush1.msra.mxu0 %v649
      %651 = vmatprep.subr.mxu0 0.0
      %v652 = vand.u32 %v56, 4294901760
      %653 = vmatpush1.msra.mxu0 %v652
      %654 = vmatprep.subr.mxu0 0.0
      %v655 = vand.u32 %v57, 4294901760
      %656 = vmatpush1.msra.mxu0 %v655
      %657 = vmatprep.subr.mxu0 0.0
      %v658 = vand.u32 %v58, 4294901760
      %659 = vmatpush1.msra.mxu0 %v658
      %660 = vmatprep.subr.mxu0 0.0
      %v661 = vand.u32 %v59, 4294901760
      %662 = vmatpush1.msra.mxu0 %v661
      %663 = vmatprep.subr.mxu0 0.0
      %v664 = vand.u32 %v60, 4294901760
      %665 = vmatpush1.msra.mxu0 %v664
      %666 = vmatprep.subr.mxu0 0.0
      %v667 = vand.u32 %v61, 4294901760
      %668 = vmatpush1.msra.mxu0 %v667
      %669 = vmatprep.subr.mxu0 0.0
      %v670 = vand.u32 %v62, 4294901760
      %671 = vmatpush1.msra.mxu0 %v670
      %672 = vmatprep.subr.mxu0 0.0
      %v673 = vand.u32 %v63, 4294901760
      %674 = vmatpush1.msra.mxu0 %v673
      %675 = vmatprep.subr.mxu0 0.0
      %676 = vmatpush1.msra.mxu0 0.0
      %677 = vmatprep.subr.mxu0 0.0
      %678 = vmatpush1.msra.mxu0 0.0
      %679 = vmatprep.subr.mxu0 0.0
      %680 = vmatpush1.msra.mxu0 0.0
      %681 = vmatprep.subr.mxu0 0.0
      %682 = vmatpush1.msra.mxu0 0.0
      %683 = vmatprep.subr.mxu0 0.0
      %684 = vmatpush1.msra.mxu0 0.0
      %685 = vmatprep.subr.mxu0 0.0
      %686 = vmatpush1.msra.mxu0 0.0
      %687 = vmatprep.subr.mxu0 0.0
      %688 = vmatpush1.msra.mxu0 0.0
      %689 = vmatprep.subr.mxu0 0.0
      %690 = vmatpush1.msra.mxu0 0.0
      %691 = vmatprep.subr.mxu0 0.0
      %692 = vmatpush1.msra.mxu0 0.0
      %693 = vmatprep.subr.mxu0 0.0
      %694 = vmatpush1.msra.mxu0 0.0
      %695 = vmatprep.subr.mxu0 0.0
      %696 = vmatpush1.msra.mxu0 0.0
      %697 = vmatprep.subr.mxu0 0.0
      %698 = vmatpush1.msra.mxu0 0.0
      %699 = vmatprep.subr.mxu0 0.0
      %700 = vmatpush1.msra.mxu0 0.0
      %701 = vmatprep.subr.mxu0 0.0
      %702 = vmatpush1.msra.mxu0 0.0
      %703 = vmatprep.subr.mxu0 0.0
      %704 = vmatpush1.msra.mxu0 0.0
      %705 = vmatprep.subr.mxu0 0.0
      %706 = vmatpush1.msra.mxu0 0.0
      %707 = vmatprep.mubr.f32.mxu0 0.0
      %v708 = vand.u32 %v72, 4294901760
      %709 = vmatmul.mubr.f32.gmra.mrb[0].mxu0 %v708
      %v710 = vpop.f32.mrb[0].mxu0
      %v711 = vadd.f32 %v624, %v710
      %v712 = vpop.f32.mrb[0].mxu0
      %713 = vdwg.mxu0
      %v714 = vmul.f32 %v72, %v46
      %v715 = vmul.f32 %v711, %v47
      %v716 = vadd.f32 %v714, %v715
      %s717 = scalar_lea.vmem [#allocation7], %s70
      %718 = vst [vmem:[%s717] sm:$0x3] %v716
    $region30: #{tpu_custom_call.1} parent=1 // loop_footer
      %s69 = sadd.s32 1, %s65
    $region31: #{tpu_custom_call.1} parent=1 // loop_footer_branch
      %64 = sbr.rel target = $region27
    $region32: #{tpu_custom_call.1} parent=1 // loop_exit
      _
    // Predicated region
    $region33: #{tpu_custom_call.1} parent=1 // pred_check
      _
    $region34: #{tpu_custom_call.1} parent=1 // pred_check_branch
      %720 = sbr.rel (0) target = $region36
    $region35: #{tpu_custom_call.1} parent=1 // pred_region
      %s722 = ssub.s32 64, 64
      %723 = vsyncadd [#allocation4], %s722
      %s724 = sshll.u32 [#allocation7], 4
      %s725 = int_to_ptr.vmem [resolvable:$true] %s724
      %730 = dma.vmem_to_hbm [thread:$0]  %s725, 64, %s4, [#allocation4], 32, 32, 2
    $region36: #{tpu_custom_call.1} parent=1 // pred_fallthru
      _
    // Predicated region
    $region37: #{tpu_custom_call.1} parent=1 // pred_check
      _
    $region38: #{tpu_custom_call.1} parent=1 // pred_check_branch
      %732 = sbr.rel (0) target = $region40
    $region39: #{tpu_custom_call.1} parent=1 // pred_region
      %733 = dma.done [#allocation4], 64
    $region40: #{tpu_custom_call.1} parent=1 // pred_fallthru
      _
    %734 = vsyncpa [#allocation3], 1
    %735 = vsyncpa [#allocation6], 1
    %736 = vsyncpa [#allocation4], 1

</llo_original>
